<compile_context>
chip_gen: v6e
topology: v6e:2x2x1
jax: 0.10.0
libtpu: 0.0.40
codegen_flags: <defaults>
</compile_context>

<pallas_src>
import functools

import jax
import jax.numpy as jnp
from jax.experimental import pallas as pl
from jax.experimental.pallas import tpu as pltpu


# ---------------------------------------------------------------------------
# Kernel
# ---------------------------------------------------------------------------
def ffnn_kernel(x_ref, w1_ref, b1_ref, w2_ref, b2_ref, w3_ref, b3_ref, out_ref):
    # x_ref:  (TB, D)    f32   (D = raw embed dim, cast to bf16 in-kernel)
    # wK_ref: (in, outp) bf16  (VMEM-resident, constant index_map)
    # bK_ref: (1, outp)  f32   (b3 padded lanes pre-filled with -1e30)
    # out_ref:(TB, Cp)   f32   (lane-dense, Cp = 128)
    x = x_ref[...].astype(jnp.bfloat16)

    # layer 1 + ReLU (bf16 MXU, f32 accumulation, f32 elementwise)
    h1 = jnp.dot(x, w1_ref[...], preferred_element_type=jnp.float32) + b1_ref[...]
    h1 = jnp.maximum(h1, 0.0)

    # layer 2 + ReLU
    h2 = jnp.dot(h1.astype(jnp.bfloat16), w2_ref[...],
                 preferred_element_type=jnp.float32) + b2_ref[...]
    h2 = jnp.maximum(h2, 0.0)

    # layer 3 (logits); padded class lanes come out as exactly -1e30 because
    # their W3 columns are zero and their bias lanes were set to -1e30.
    logits = jnp.dot(h2.astype(jnp.bfloat16), w3_ref[...],
                     preferred_element_type=jnp.float32) + b3_ref[...]

    # log-softmax over the class axis (== LogSoftmax(dim=0) per example)
    m = jnp.max(logits, axis=-1, keepdims=True)
    shifted = logits - m
    lse = jnp.log(jnp.sum(jnp.exp(shifted), axis=-1, keepdims=True))
    out_ref[...] = shifted - lse


# ---------------------------------------------------------------------------
# Param prep (done ONCE, not per forward)
# ---------------------------------------------------------------------------
def _round_up(n, m):
    return ((n + m - 1) // m) * m


def prepare_params(params):
    """PyTorch-convention params -> (in,out)-transposed, output-padded bf16.

    * Input dim of layer 1 is left UNPADDED so raw (B, D) f32 activations can
      be fed straight into the kernel (no wrapper-side pad/convert).
    * Padded output lanes of b3 are set to a finite -1e30 so the kernel needs
      no explicit class-lane masking.
    """
    w1, b1 = params["w1"], params["b1"]   # (H1, D), (H1,)
    w2, b2 = params["w2"], params["b2"]   # (H2, H1), (H2,)
    w3, b3 = params["w3"], params["b3"]   # (C, H2), (C,)

    D, H1, H2, C = w1.shape[1], w1.shape[0], w2.shape[0], w3.shape[0]
    H1p, H2p, Cp = _round_up(H1, 128), _round_up(H2, 128), _round_up(C, 128)

    def prep(w, b, in_dim, in_pad, out_pad, bias_pad_value=0.0):
        wt = jnp.pad(w.T.astype(jnp.float32),
                     ((0, in_pad - in_dim), (0, out_pad - w.shape[0])))
        bp = jnp.pad(b.astype(jnp.float32), (0, out_pad - b.shape[0]),
                     constant_values=bias_pad_value).reshape(1, out_pad)
        return wt.astype(jnp.bfloat16), bp

    w1p, b1p = prep(w1, b1, D, D, H1p)                       # (D, H1p) unpadded K
    w2p, b2p = prep(w2, b2, H1, H1p, H2p)
    w3p, b3p = prep(w3, b3, H2, H2p, Cp, bias_pad_value=-1e30)  # mask baked in
    return {"w1": w1p, "b1": b1p, "w2": w2p, "b2": b2p, "w3": w3p, "b3": b3p}


# ---------------------------------------------------------------------------
# Grid sizing: as few grid steps as possible (1 per TensorCore)
# ---------------------------------------------------------------------------
@functools.lru_cache()
def _num_tensorcores():
    """v7x exposes 2 TensorCores per chip; v5e/v6e have 1."""
    try:
        kind = jax.devices()[0].device_kind.lower()
    except Exception:
        return 1
    return 2 if "v7" in kind else 1


def _choose_grid(batch, num_cores, max_block_b=2048):
    """Pick (Bp, block_b, steps): one tile per TensorCore, more only when a
    tile would exceed max_block_b rows.  VMEM is not a constraint here."""
    steps = max(num_cores, (batch + max_block_b - 1) // max_block_b)
    if batch < steps * 8:        # don't make sub-8-row tiles for tiny batches
        steps = 1
    block_b = _round_up((batch + steps - 1) // steps, 8)
    return block_b * steps, block_b, steps


# ---------------------------------------------------------------------------
# Forward
# ---------------------------------------------------------------------------
@functools.partial(jax.jit, static_argnames=("num_cores",))
def ffnn_forward_padded(x, prepped, *, num_cores=1):
    """Fused forward.  Returns the padded (Bp, Cp=128) lane-dense log-prob
    buffer; real examples are rows [:B], real classes are lanes [:C]."""
    B, D = x.shape
    assert D == prepped["w1"].shape[0], "embed dim mismatch with prepared params"
    H1p = prepped["w1"].shape[1]
    H2p = prepped["w2"].shape[1]
    Cp = prepped["w3"].shape[1]

    Bp, block_b, steps = _choose_grid(B, num_cores)
    # Only a row-pad (no dtype convert, no feature pad); identity when Bp == B.
    xp = x if Bp == B else jnp.pad(x, ((0, Bp - B), (0, 0)))

    # TODO(synk): if this forward runs in a tight inference loop, weight DMA
    # could additionally be hidden behind the previous call via a cross-call
    # semaphore/VMEM-ref future (P10); not needed for a single call.
    return pl.pallas_call(
        ffnn_kernel,
        out_shape=jax.ShapeDtypeStruct((Bp, Cp), jnp.float32),
        grid=(steps,),
        in_specs=[
            pl.BlockSpec((block_b, D), lambda b: (b, 0)),   # activations stream
            pl.BlockSpec((D, H1p), lambda b: (0, 0)),       # weights VMEM-resident
            pl.BlockSpec((1, H1p), lambda b: (0, 0)),
            pl.BlockSpec((H1p, H2p), lambda b: (0, 0)),
            pl.BlockSpec((1, H2p), lambda b: (0, 0)),
            pl.BlockSpec((H2p, Cp), lambda b: (0, 0)),
            pl.BlockSpec((1, Cp), lambda b: (0, 0)),
        ],
        out_specs=pl.BlockSpec((block_b, Cp), lambda b: (b, 0)),
        compiler_params=pltpu.CompilerParams(
            dimension_semantics=("parallel",)),
    )(xp, prepped["w1"], prepped["b1"], prepped["w2"], prepped["b2"],
      prepped["w3"], prepped["b3"])


def ffnn_forward_batched(x, prepped, n_classes):
    """Convenience path: rows are independent examples; returns (B, n_classes).
    (The trailing slice is a small XLA op -- downstream consumers that can use
    the padded buffer should call ffnn_forward_padded directly.)"""
    out = ffnn_forward_padded(x, prepped, num_cores=_num_tensorcores())
    return out[:x.shape[0], :n_classes]


def ffnn_forward(x, prepped, n_classes):
    """Single-example forward matching the original FFNN.forward (x: (D,))."""
    return ffnn_forward_batched(x.reshape(1, -1), prepped, n_classes)[0]


# ---------------------------------------------------------------------------
# Init + references
# ---------------------------------------------------------------------------
def init_params(key, embed_dim, hid1, hid2, n_classes):
    """PyTorch nn.Linear default init: U(-1/sqrt(fan_in), 1/sqrt(fan_in))."""
    ks = jax.random.split(key, 6)

    def lin(kw, kb, fan_in, fan_out):
        bound = 1.0 / jnp.sqrt(float(fan_in))
        w = jax.random.uniform(kw, (fan_out, fan_in), jnp.float32, -bound, bound)
        b = jax.random.uniform(kb, (fan_out,), jnp.float32, -bound, bound)
        return w, b

    w1, b1 = lin(ks[0], ks[1], embed_dim, hid1)
    w2, b2 = lin(ks[2], ks[3], hid1, hid2)
    w3, b3 = lin(ks[4], ks[5], hid2, n_classes)
    return {"w1": w1, "b1": b1, "w2": w2, "b2": b2, "w3": w3, "b3": b3}


def ffnn_reference_f32(x, params):
    """Pure-JAX f32 reference of the PyTorch forward (rows = examples)."""
    h1 = jnp.maximum(x @ params["w1"].T + params["b1"], 0.0)
    h2 = jnp.maximum(h1 @ params["w2"].T + params["b2"], 0.0)
    logits = h2 @ params["w3"].T + params["b3"]
    return jax.nn.log_softmax(logits, axis=-1)


def ffnn_reference_bf16(x, prepped, n_classes):
    """Pure-JAX reference replicating the kernel's exact bf16/padded math."""
    h1 = jnp.maximum(jnp.dot(x.astype(jnp.bfloat16), prepped["w1"],
                             preferred_element_type=jnp.float32) + prepped["b1"], 0.0)
    h2 = jnp.maximum(jnp.dot(h1.astype(jnp.bfloat16), prepped["w2"],
                             preferred_element_type=jnp.float32) + prepped["b2"], 0.0)
    logits = jnp.dot(h2.astype(jnp.bfloat16), prepped["w3"],
                     preferred_element_type=jnp.float32) + prepped["b3"]
    m = jnp.max(logits, axis=-1, keepdims=True)
    shifted = logits - m
    lse = jnp.log(jnp.sum(jnp.exp(shifted), axis=-1, keepdims=True))
    return (shifted - lse)[:, :n_classes]


# ---------------------------------------------------------------------------
if __name__ == "__main__":
    key = jax.random.PRNGKey(0)
    k_x, k_p = jax.random.split(key)

    embed_dim = 32   # pretrained_embeds.shape[1]
    hid1 = 64
    hid2 = 64
    n_classes = 4    # len(LABEL_INDICES)
    batch = 256      # rows = independent examples fed through the module

    params = init_params(k_p, embed_dim, hid1, hid2, n_classes)
    prepped = prepare_params(params)
    xb = jax.random.normal(k_x, (batch, embed_dim), jnp.float32)

    out = ffnn_forward_batched(xb, prepped, n_classes)
    out = jax.block_until_ready(out)
    assert out.shape == (batch, n_classes)
    assert bool(jnp.all(jnp.isfinite(out)))

    # strict check: identical bf16/padded math in pure JAX
    ref_bf16 = ffnn_reference_bf16(xb, prepped, n_classes)
    assert jnp.allclose(out, ref_bf16, atol=1e-4, rtol=1e-4), \
        (jnp.max(jnp.abs(out - ref_bf16)))

    # loose check: full-precision module semantics (bf16 weight-cast error only)
    ref_f32 = ffnn_reference_f32(xb, params)
    assert jnp.allclose(out, ref_f32, atol=5e-2, rtol=5e-2), \
        (jnp.max(jnp.abs(out - ref_f32)))

    # single-example path == original FFNN.forward (LogSoftmax(dim=0) on 1-D out)
    out1 = jax.block_until_ready(ffnn_forward(xb[0], prepped, n_classes))
    assert out1.shape == (n_classes,)
    assert jnp.allclose(out1, ref_bf16[0], atol=1e-4, rtol=1e-4)

    print("KERNEL_OK")
</pallas_src>

<mosaic_0001>
module attributes {stable_mosaic.version = 11 : i64} {
  func.func @ffnn_kernel(%arg0: i32, %arg1: memref<256x32xf32, #tpu.memory_space<vmem>>, %arg2: memref<32x128xbf16, #tpu.memory_space<vmem>>, %arg3: memref<1x128xf32, #tpu.memory_space<vmem>>, %arg4: memref<128x128xbf16, #tpu.memory_space<vmem>>, %arg5: memref<1x128xf32, #tpu.memory_space<vmem>>, %arg6: memref<128x128xbf16, #tpu.memory_space<vmem>>, %arg7: memref<1x128xf32, #tpu.memory_space<vmem>>, %arg8: memref<256x128xf32, #tpu.memory_space<vmem>>) attributes {dimension_semantics = [#tpu.dimension_semantics<parallel>], iteration_bounds = array<i64: 1>, scalar_prefetch = 0 : i64, scratch_operands = 0 : i64, tpu.core_type = #tpu.core_type<tc>, window_params = [{transform_indices = @transform_0, window_bounds = array<i64: 256, 32>}, {pipeline_mode = #tpu.pipeline_mode<synchronous>, transform_indices = @transform_1, window_bounds = array<i64: 32, 128>}, {pipeline_mode = #tpu.pipeline_mode<synchronous>, transform_indices = @transform_2, window_bounds = array<i64: 1, 128>}, {pipeline_mode = #tpu.pipeline_mode<synchronous>, transform_indices = @transform_3, window_bounds = array<i64: 128, 128>}, {pipeline_mode = #tpu.pipeline_mode<synchronous>, transform_indices = @transform_4, window_bounds = array<i64: 1, 128>}, {pipeline_mode = #tpu.pipeline_mode<synchronous>, transform_indices = @transform_5, window_bounds = array<i64: 128, 128>}, {pipeline_mode = #tpu.pipeline_mode<synchronous>, transform_indices = @transform_6, window_bounds = array<i64: 1, 128>}, {transform_indices = @transform_7, window_bounds = array<i64: 256, 128>}]} {
    %c0 = arith.constant 0 : index
    %c0_0 = arith.constant 0 : index
    %0 = vector.load %arg1[%c0, %c0_0] : memref<256x32xf32, #tpu.memory_space<vmem>>, vector<256x32xf32>
    %1 = arith.truncf %0 : vector<256x32xf32> to vector<256x32xbf16>
    %c0_1 = arith.constant 0 : index
    %c0_2 = arith.constant 0 : index
    %2 = vector.load %arg2[%c0_1, %c0_2] : memref<32x128xbf16, #tpu.memory_space<vmem>>, vector<32x128xbf16>
    %cst = arith.constant dense<0.000000e+00> : vector<256x128xf32>
    %3 = tpu.matmul %1, %2, %cst {dimension_numbers = #tpu.dot_dimension_numbers<[1], [0], [0], [1], [0, 0, 1, 1], [], []>} : vector<256x32xbf16>, vector<32x128xbf16>, vector<256x128xf32> -> vector<256x128xf32>
    %c0_3 = arith.constant 0 : index
    %c0_4 = arith.constant 0 : index
    %4 = vector.load %arg3[%c0_3, %c0_4] : memref<1x128xf32, #tpu.memory_space<vmem>>, vector<1x128xf32>
    %5 = vector.broadcast %4 : vector<1x128xf32> to vector<256x128xf32>
    %6 = arith.addf %3, %5 : vector<256x128xf32>
    %cst_5 = arith.constant 0.000000e+00 : f32
    %7 = vector.broadcast %cst_5 : f32 to vector<256x128xf32>
    %8 = arith.maximumf %6, %7 : vector<256x128xf32>
    %9 = arith.truncf %8 : vector<256x128xf32> to vector<256x128xbf16>
    %c0_6 = arith.constant 0 : index
    %c0_7 = arith.constant 0 : index
    %10 = vector.load %arg4[%c0_6, %c0_7] : memref<128x128xbf16, #tpu.memory_space<vmem>>, vector<128x128xbf16>
    %cst_8 = arith.constant dense<0.000000e+00> : vector<256x128xf32>
    %11 = tpu.matmul %9, %10, %cst_8 {dimension_numbers = #tpu.dot_dimension_numbers<[1], [0], [0], [1], [0, 0, 1, 1], [], []>} : vector<256x128xbf16>, vector<128x128xbf16>, vector<256x128xf32> -> vector<256x128xf32>
    %c0_9 = arith.constant 0 : index
    %c0_10 = arith.constant 0 : index
    %12 = vector.load %arg5[%c0_9, %c0_10] : memref<1x128xf32, #tpu.memory_space<vmem>>, vector<1x128xf32>
    %13 = vector.broadcast %12 : vector<1x128xf32> to vector<256x128xf32>
    %14 = arith.addf %11, %13 : vector<256x128xf32>
    %cst_11 = arith.constant 0.000000e+00 : f32
    %15 = vector.broadcast %cst_11 : f32 to vector<256x128xf32>
    %16 = arith.maximumf %14, %15 : vector<256x128xf32>
    %17 = arith.truncf %16 : vector<256x128xf32> to vector<256x128xbf16>
    %c0_12 = arith.constant 0 : index
    %c0_13 = arith.constant 0 : index
    %18 = vector.load %arg6[%c0_12, %c0_13] : memref<128x128xbf16, #tpu.memory_space<vmem>>, vector<128x128xbf16>
    %cst_14 = arith.constant dense<0.000000e+00> : vector<256x128xf32>
    %19 = tpu.matmul %17, %18, %cst_14 {dimension_numbers = #tpu.dot_dimension_numbers<[1], [0], [0], [1], [0, 0, 1, 1], [], []>} : vector<256x128xbf16>, vector<128x128xbf16>, vector<256x128xf32> -> vector<256x128xf32>
    %c0_15 = arith.constant 0 : index
    %c0_16 = arith.constant 0 : index
    %20 = vector.load %arg7[%c0_15, %c0_16] : memref<1x128xf32, #tpu.memory_space<vmem>>, vector<1x128xf32>
    %21 = vector.broadcast %20 : vector<1x128xf32> to vector<256x128xf32>
    %22 = arith.addf %19, %21 : vector<256x128xf32>
    %cst_17 = arith.constant dense<0xFF800000> : vector<256xf32>
    %23 = vector.multi_reduction <maximumf>, %22, %cst_17 [1] : vector<256x128xf32> to vector<256xf32>
    %24 = vector.shape_cast %23 : vector<256xf32> to vector<256x1xf32>
    %25 = vector.broadcast %24 : vector<256x1xf32> to vector<256x128xf32>
    %26 = arith.subf %22, %25 : vector<256x128xf32>
    %27 = math.exp %26 : vector<256x128xf32>
    %cst_18 = arith.constant dense<0.000000e+00> : vector<256xf32>
    %28 = vector.multi_reduction <add>, %27, %cst_18 [1] : vector<256x128xf32> to vector<256xf32>
    %29 = vector.shape_cast %28 : vector<256xf32> to vector<256x1xf32>
    %30 = math.log %29 : vector<256x1xf32>
    %31 = vector.broadcast %30 : vector<256x1xf32> to vector<256x128xf32>
    %32 = arith.subf %26, %31 : vector<256x128xf32>
    %c0_19 = arith.constant 0 : index
    %c0_20 = arith.constant 0 : index
    %33 = vector.load %arg8[%c0_19, %c0_20] : memref<256x128xf32, #tpu.memory_space<vmem>>, vector<256x128xf32>
    tpu.vector_store %arg8[%c0_19, %c0_20], %32 {strides = array<i32>} : memref<256x128xf32, #tpu.memory_space<vmem>>, vector<256x128xf32>,
    return
  }
  func.func @transform_0(%arg0: i32) -> (i32, i32) {
    %c0_i32 = arith.constant 0 : i32
    %c0_i32_0 = arith.constant 0 : i32
    return %arg0, %c0_i32 : i32, i32
  }
  func.func @transform_1(%arg0: i32) -> (i32, i32) {
    %c0_i32 = arith.constant 0 : i32
    %c0_i32_0 = arith.constant 0 : i32
    %c0_i32_1 = arith.constant 0 : i32
    return %c0_i32, %c0_i32_0 : i32, i32
  }
  func.func @transform_2(%arg0: i32) -> (i32, i32) {
    %c0_i32 = arith.constant 0 : i32
    %c0_i32_0 = arith.constant 0 : i32
    %c0_i32_1 = arith.constant 0 : i32
    return %c0_i32, %c0_i32_0 : i32, i32
  }
  func.func @transform_3(%arg0: i32) -> (i32, i32) {
    %c0_i32 = arith.constant 0 : i32
    %c0_i32_0 = arith.constant 0 : i32
    %c0_i32_1 = arith.constant 0 : i32
    return %c0_i32, %c0_i32_0 : i32, i32
  }
  func.func @transform_4(%arg0: i32) -> (i32, i32) {
    %c0_i32 = arith.constant 0 : i32
    %c0_i32_0 = arith.constant 0 : i32
    %c0_i32_1 = arith.constant 0 : i32
    return %c0_i32, %c0_i32_0 : i32, i32
  }
  func.func @transform_5(%arg0: i32) -> (i32, i32) {
    %c0_i32 = arith.constant 0 : i32
    %c0_i32_0 = arith.constant 0 : i32
    %c0_i32_1 = arith.constant 0 : i32
    return %c0_i32, %c0_i32_0 : i32, i32
  }
  func.func @transform_6(%arg0: i32) -> (i32, i32) {
    %c0_i32 = arith.constant 0 : i32
    %c0_i32_0 = arith.constant 0 : i32
    %c0_i32_1 = arith.constant 0 : i32
    return %c0_i32, %c0_i32_0 : i32, i32
  }
  func.func @transform_7(%arg0: i32) -> (i32, i32) {
    %c0_i32 = arith.constant 0 : i32
    %c0_i32_0 = arith.constant 0 : i32
    return %arg0, %c0_i32 : i32, i32
  }
}

</mosaic_0001>

<llo_original>
// kernel: ffnn_forward_padded.1
$region0: #{ffnn_forward_padded.1}
  #allocation0 [shape = 'u32[]', space=smem, size = 0x4, offset = 0x4, fixed_abs, tag = 'smem constant byte address 0x4 - core index']
  #allocation1 [shape = 'u32[144,128]{1,0:T(1,128)}', space=vmem, size = 0x12000, scoped, tag = 'internal scratch']
  %s0 = inlined_call_operand.vmem [shape: f32[256,32], index: 0, kind: input, shape index: {}]
  %s1 = inlined_call_operand.vmem [shape: bf16[32,128], index: 1, kind: input, shape index: {}]
  %s2 = inlined_call_operand.vmem [shape: f32[1,128], index: 2, kind: input, shape index: {}]
  %s3 = inlined_call_operand.vmem [shape: bf16[128,128], index: 3, kind: input, shape index: {}]
  %s4 = inlined_call_operand.vmem [shape: f32[1,128], index: 4, kind: input, shape index: {}]
  %s5 = inlined_call_operand.vmem [shape: bf16[128,128], index: 5, kind: input, shape index: {}]
  %s6 = inlined_call_operand.vmem [shape: f32[1,128], index: 6, kind: input, shape index: {}]
  %s7 = inlined_call_operand.hbm [shape: f32[256,128], index: 7, kind: output, shape index: {}]
  %s8 = sld [smem:[#allocation0]]
  $region38: #{ffnn_forward_padded.1} parent=0
    _
  %s10 = ssub.s32 1, %s8
  %s11 = scalar_select 0, %s10, %s8
  $region1: #{ffnn_forward_padded.1} parent=0
    #allocation2 [shape = 'u8[131072]{0}', space=vmem, size = 0x20000, scoped, tag = 'output window, operand 0, single buffered']
    #allocation3 [shape = 's32[1]{0}', space=sflag, size = 0x4, scoped, tag = 'scoped memory for ffnn_forward_padded.1']
    %12 = vsyncpa [#allocation3], 0
    // Predicated region
    $region2: #{ffnn_forward_padded.1} parent=1 // pred_check
      _
    $region3: #{ffnn_forward_padded.1} parent=1 // pred_check_branch
      %14 = sbr.rel (0) target = $region5
    $region4: #{ffnn_forward_padded.1} parent=1 // pred_region
      _
    $region5: #{ffnn_forward_padded.1} parent=1 // pred_fallthru
      _
    // Predicated region
    $region6: #{ffnn_forward_padded.1} parent=1 // pred_check
      _
    $region7: #{ffnn_forward_padded.1} parent=1 // pred_check_branch
      %16 = sbr.rel (0) target = $region9
    $region8: #{ffnn_forward_padded.1} parent=1 // pred_region
      _
    $region9: #{ffnn_forward_padded.1} parent=1 // pred_fallthru
      _
    // Predicated region
    $region10: #{ffnn_forward_padded.1} parent=1 // pred_check
      _
    $region11: #{ffnn_forward_padded.1} parent=1 // pred_check_branch
      %18 = sbr.rel (0) target = $region13
    $region12: #{ffnn_forward_padded.1} parent=1 // pred_region
      _
    $region13: #{ffnn_forward_padded.1} parent=1 // pred_fallthru
      _
    // Predicated region
    $region14: #{ffnn_forward_padded.1} parent=1 // pred_check
      _
    $region15: #{ffnn_forward_padded.1} parent=1 // pred_check_branch
      %20 = sbr.rel (0) target = $region17
    $region16: #{ffnn_forward_padded.1} parent=1 // pred_region
      _
    $region17: #{ffnn_forward_padded.1} parent=1 // pred_fallthru
      _
    // Predicated region
    $region18: #{ffnn_forward_padded.1} parent=1 // pred_check
      _
    $region19: #{ffnn_forward_padded.1} parent=1 // pred_check_branch
      %22 = sbr.rel (0) target = $region21
    $region20: #{ffnn_forward_padded.1} parent=1 // pred_region
      _
    $region21: #{ffnn_forward_padded.1} parent=1 // pred_fallthru
      _
    // Predicated region
    $region22: #{ffnn_forward_padded.1} parent=1 // pred_check
      _
    $region23: #{ffnn_forward_padded.1} parent=1 // pred_check_branch
      %24 = sbr.rel (0) target = $region25
    $region24: #{ffnn_forward_padded.1} parent=1 // pred_region
      _
    $region25: #{ffnn_forward_padded.1} parent=1 // pred_fallthru
      _
    // Predicated region
    $region26: #{ffnn_forward_padded.1} parent=1 // pred_check
      _
    $region27: #{ffnn_forward_padded.1} parent=1 // pred_check_branch
      %26 = sbr.rel (0) target = $region29
    $region28: #{ffnn_forward_padded.1} parent=1 // pred_region
      _
    $region29: #{ffnn_forward_padded.1} parent=1 // pred_fallthru
      _
    %v28 = vld [vmem:[%s0] sm:$0xff]
    %v29 = vld [vmem:[%s0 + $0x8] sm:$0xff]
    %v30 = vld [vmem:[%s0 + $0x10] sm:$0xff]
    %v31 = vld [vmem:[%s0 + $0x18] sm:$0xff]
    %v32 = vld [vmem:[%s0 + $0x20] sm:$0xff]
    %v33 = vld [vmem:[%s0 + $0x28] sm:$0xff]
    %v34 = vld [vmem:[%s0 + $0x30] sm:$0xff]
    %v35 = vld [vmem:[%s0 + $0x38] sm:$0xff]
    %v36 = vld [vmem:[%s0 + $0x40] sm:$0xff]
    %v37 = vld [vmem:[%s0 + $0x48] sm:$0xff]
    %v38 = vld [vmem:[%s0 + $0x50] sm:$0xff]
    %v39 = vld [vmem:[%s0 + $0x58] sm:$0xff]
    %v40 = vld [vmem:[%s0 + $0x60] sm:$0xff]
    %v41 = vld [vmem:[%s0 + $0x68] sm:$0xff]
    %v42 = vld [vmem:[%s0 + $0x70] sm:$0xff]
    %v43 = vld [vmem:[%s0 + $0x78] sm:$0xff]
    %v44 = vld [vmem:[%s0 + $0x80] sm:$0xff]
    %v45 = vld [vmem:[%s0 + $0x88] sm:$0xff]
    %v46 = vld [vmem:[%s0 + $0x90] sm:$0xff]
    %v47 = vld [vmem:[%s0 + $0x98] sm:$0xff]
    %v48 = vld [vmem:[%s0 + $0xa0] sm:$0xff]
    %v49 = vld [vmem:[%s0 + $0xa8] sm:$0xff]
    %v50 = vld [vmem:[%s0 + $0xb0] sm:$0xff]
    %v51 = vld [vmem:[%s0 + $0xb8] sm:$0xff]
    %v52 = vld [vmem:[%s0 + $0xc0] sm:$0xff]
    %v53 = vld [vmem:[%s0 + $0xc8] sm:$0xff]
    %v54 = vld [vmem:[%s0 + $0xd0] sm:$0xff]
    %v55 = vld [vmem:[%s0 + $0xd8] sm:$0xff]
    %v56 = vld [vmem:[%s0 + $0xe0] sm:$0xff]
    %v57 = vld [vmem:[%s0 + $0xe8] sm:$0xff]
    %v58 = vld [vmem:[%s0 + $0xf0] sm:$0xff]
    %v59 = vld [vmem:[%s0 + $0xf8] sm:$0xff]
    %v60 = vpack.c.bf16 %v29, %v28
    %v61 = vpack.c.bf16 %v31, %v30
    %v62 = vpack.c.bf16 %v33, %v32
    %v63 = vpack.c.bf16 %v35, %v34
    %v64 = vpack.c.bf16 %v37, %v36
    %v65 = vpack.c.bf16 %v39, %v38
    %v66 = vpack.c.bf16 %v41, %v40
    %v67 = vpack.c.bf16 %v43, %v42
    %v68 = vpack.c.bf16 %v45, %v44
    %v69 = vpack.c.bf16 %v47, %v46
    %v70 = vpack.c.bf16 %v49, %v48
    %v71 = vpack.c.bf16 %v51, %v50
    %v72 = vpack.c.bf16 %v53, %v52
    %v73 = vpack.c.bf16 %v55, %v54
    %v74 = vpack.c.bf16 %v57, %v56
    %v75 = vpack.c.bf16 %v59, %v58
    %v76 = vld [vmem:[%s1] sm:$0xf]
    %v77 = vld [vmem:[%s1 + $0x4] sm:$0xf]
    %v78 = vld [vmem:[%s1 + $0x8] sm:$0xf]
    %v79 = vld [vmem:[%s1 + $0xc] sm:$0xf]
    %v80 = vld [vmem:[%s2] sm:$0x1]
    %v82 = vlaneseq
    %v83 = vshrl.u32 %v82, 7
    %v84 = vsub.s32 0, %v83
    %v85 = vrot.slane %v80, %v84
    %v91 = vunpack.c.l.b16 %v76
    %v92 = vunpack.c.l.b16 %v77
    %v93 = vunpack.c.l.b16 %v78
    %v94 = vunpack.c.l.b16 %v79
    %v95 = vpack.c.b16 %v92, %v91
    %v96 = vpack.c.b16 %v94, %v93
    %vm99 = vcmask 261120
    %v101 = vsel %vm99, %v60, 0
    %v104 = vsel %vm99, %v61, 0
    %v107 = vsel %vm99, %v62, 0
    %v110 = vsel %vm99, %v63, 0
    %v113 = vsel %vm99, %v64, 0
    %v116 = vsel %vm99, %v65, 0
    %v119 = vsel %vm99, %v66, 0
    %v122 = vsel %vm99, %v67, 0
    %v125 = vsel %vm99, %v68, 0
    %v128 = vsel %vm99, %v69, 0
    %v131 = vsel %vm99, %v70, 0
    %v134 = vsel %vm99, %v71, 0
    %v137 = vsel %vm99, %v72, 0
    %v140 = vsel %vm99, %v73, 0
    %v143 = vsel %vm99, %v74, 0
    %v146 = vsel %vm99, %v75, 0
    %148 = vmatprep.subr.bf16.mxu0 0
    %149 = vmatpush1.bf16.msra.mxu0 0
    %150 = vmatprep.subr.bf16.mxu0 0
    %151 = vmatpush1.bf16.msra.mxu0 0
    %152 = vmatprep.subr.bf16.mxu0 0
    %153 = vmatpush1.bf16.msra.mxu0 0
    %154 = vmatprep.subr.bf16.mxu0 0
    %155 = vmatpush1.bf16.msra.mxu0 0
    %156 = vmatprep.subr.bf16.mxu0 0
    %157 = vmatpush1.bf16.msra.mxu0 0
    %158 = vmatprep.subr.bf16.mxu0 0
    %159 = vmatpush1.bf16.msra.mxu0 0
    %160 = vmatprep.subr.bf16.mxu0 0
    %161 = vmatpush1.bf16.msra.mxu0 %v96
    %162 = vmatprep.subr.bf16.mxu0 0
    %163 = vmatpush1.bf16.msra.mxu0 %v95
    %164 = vmatprep.subr.bf16.mxu0 0
    %165 = vmatpush2.bf16.msra.mxu0 0
    %166 = vmatprep.subr.bf16.mxu0 0
    %167 = vmatpush2.bf16.msra.mxu0 0
    %168 = vmatprep.subr.bf16.mxu0 0
    %169 = vmatpush2.bf16.msra.mxu0 0
    %170 = vmatprep.subr.bf16.mxu0 0
    %171 = vmatpush2.bf16.msra.mxu0 0
    %172 = vmatprep.subr.bf16.mxu0 0
    %173 = vmatpush2.bf16.msra.mxu0 0
    %174 = vmatprep.subr.bf16.mxu0 0
    %175 = vmatpush2.bf16.msra.mxu0 0
    %176 = vmatprep.subr.bf16.mxu0 0
    %177 = vmatpush2.bf16.msra.mxu0 0
    %178 = vmatprep.subr.bf16.mxu0 0
    %179 = vmatpush2.bf16.msra.mxu0 0
    %180 = vmatprep.mubr.bf16.mxu0 0
    %181 = vmatmul.mubr.bf16.gmra.mxu0 %v101
    %v182 = vpop.f32.mrf.mxu0
    %v183 = vadd.f32 %v85, %v182
    %v184 = vpop.f32.mrf.mxu0
    %v185 = vpop.f32.mrf.mxu0
    %v186 = vadd.f32 %v85, %v185
    %v187 = vpop.f32.mrf.mxu0
    %188 = vmatprep.mubr.bf16.mxu0 0
    %189 = vmatmul.mubr.bf16.gmra.mxu0 %v104
    %v190 = vpop.f32.mrf.mxu0
    %v191 = vadd.f32 %v85, %v190
    %v192 = vpop.f32.mrf.mxu0
    %v193 = vpop.f32.mrf.mxu0
    %v194 = vadd.f32 %v85, %v193
    %v195 = vpop.f32.mrf.mxu0
    %196 = vmatprep.mubr.bf16.mxu0 0
    %197 = vmatmul.mubr.bf16.gmra.mxu0 %v107
    %v198 = vpop.f32.mrf.mxu0
    %v199 = vadd.f32 %v85, %v198
    %v200 = vpop.f32.mrf.mxu0
    %v201 = vpop.f32.mrf.mxu0
    %v202 = vadd.f32 %v85, %v201
    %v203 = vpop.f32.mrf.mxu0
    %204 = vmatprep.mubr.bf16.mxu0 0
    %205 = vmatmul.mubr.bf16.gmra.mxu0 %v110
    %v206 = vpop.f32.mrf.mxu0
    %v207 = vadd.f32 %v85, %v206
    %v208 = vpop.f32.mrf.mxu0
    %v209 = vpop.f32.mrf.mxu0
    %v210 = vadd.f32 %v85, %v209
    %v211 = vpop.f32.mrf.mxu0
    %212 = vmatprep.mubr.bf16.mxu0 0
    %213 = vmatmul.mubr.bf16.gmra.mxu0 %v113
    %v214 = vpop.f32.mrf.mxu0
    %v215 = vadd.f32 %v85, %v214
    %v216 = vpop.f32.mrf.mxu0
    %v217 = vpop.f32.mrf.mxu0
    %v218 = vadd.f32 %v85, %v217
    %v219 = vpop.f32.mrf.mxu0
    %220 = vmatprep.mubr.bf16.mxu0 0
    %221 = vmatmul.mubr.bf16.gmra.mxu0 %v116
    %v222 = vpop.f32.mrf.mxu0
    %v223 = vadd.f32 %v85, %v222
    %v224 = vpop.f32.mrf.mxu0
    %v225 = vpop.f32.mrf.mxu0
    %v226 = vadd.f32 %v85, %v225
    %v227 = vpop.f32.mrf.mxu0
    %228 = vmatprep.mubr.bf16.mxu0 0
    %229 = vmatmul.mubr.bf16.gmra.mxu0 %v119
    %v230 = vpop.f32.mrf.mxu0
    %v231 = vadd.f32 %v85, %v230
    %v232 = vpop.f32.mrf.mxu0
    %v233 = vpop.f32.mrf.mxu0
    %v234 = vadd.f32 %v85, %v233
    %v235 = vpop.f32.mrf.mxu0
    %236 = vmatprep.mubr.bf16.mxu0 0
    %237 = vmatmul.mubr.bf16.gmra.mxu0 %v122
    %v238 = vpop.f32.mrf.mxu0
    %v239 = vadd.f32 %v85, %v238
    %v240 = vpop.f32.mrf.mxu0
    %v241 = vpop.f32.mrf.mxu0
    %v242 = vadd.f32 %v85, %v241
    %v243 = vpop.f32.mrf.mxu0
    %244 = vmatprep.mubr.bf16.mxu0 0
    %245 = vmatmul.mubr.bf16.gmra.mxu0 %v125
    %v246 = vpop.f32.mrf.mxu0
    %v247 = vadd.f32 %v85, %v246
    %v248 = vpop.f32.mrf.mxu0
    %v249 = vpop.f32.mrf.mxu0
    %v250 = vadd.f32 %v85, %v249
    %v251 = vpop.f32.mrf.mxu0
    %252 = vmatprep.mubr.bf16.mxu0 0
    %253 = vmatmul.mubr.bf16.gmra.mxu0 %v128
    %v254 = vpop.f32.mrf.mxu0
    %v255 = vadd.f32 %v85, %v254
    %v256 = vpop.f32.mrf.mxu0
    %v257 = vpop.f32.mrf.mxu0
    %v258 = vadd.f32 %v85, %v257
    %v259 = vpop.f32.mrf.mxu0
    %260 = vmatprep.mubr.bf16.mxu0 0
    %261 = vmatmul.mubr.bf16.gmra.mxu0 %v131
    %v262 = vpop.f32.mrf.mxu0
    %v263 = vadd.f32 %v85, %v262
    %v264 = vpop.f32.mrf.mxu0
    %v265 = vpop.f32.mrf.mxu0
    %v266 = vadd.f32 %v85, %v265
    %v267 = vpop.f32.mrf.mxu0
    %268 = vmatprep.mubr.bf16.mxu0 0
    %269 = vmatmul.mubr.bf16.gmra.mxu0 %v134
    %v270 = vpop.f32.mrf.mxu0
    %v271 = vadd.f32 %v85, %v270
    %v272 = vpop.f32.mrf.mxu0
    %v273 = vpop.f32.mrf.mxu0
    %v274 = vadd.f32 %v85, %v273
    %v275 = vpop.f32.mrf.mxu0
    %276 = vmatprep.mubr.bf16.mxu0 0
    %277 = vmatmul.mubr.bf16.gmra.mxu0 %v137
    %v278 = vpop.f32.mrf.mxu0
    %v279 = vadd.f32 %v85, %v278
    %v280 = vpop.f32.mrf.mxu0
    %v281 = vpop.f32.mrf.mxu0
    %v282 = vadd.f32 %v85, %v281
    %v283 = vpop.f32.mrf.mxu0
    %284 = vmatprep.mubr.bf16.mxu0 0
    %285 = vmatmul.mubr.bf16.gmra.mxu0 %v140
    %v286 = vpop.f32.mrf.mxu0
    %v287 = vadd.f32 %v85, %v286
    %v288 = vpop.f32.mrf.mxu0
    %v289 = vpop.f32.mrf.mxu0
    %v290 = vadd.f32 %v85, %v289
    %v291 = vpop.f32.mrf.mxu0
    %292 = vmatprep.mubr.bf16.mxu0 0
    %293 = vmatmul.mubr.bf16.gmra.mxu0 %v143
    %v294 = vpop.f32.mrf.mxu0
    %v295 = vadd.f32 %v85, %v294
    %v296 = vpop.f32.mrf.mxu0
    %v297 = vpop.f32.mrf.mxu0
    %v298 = vadd.f32 %v85, %v297
    %v299 = vpop.f32.mrf.mxu0
    %300 = vmatprep.mubr.bf16.mxu0 0
    %301 = vmatmul.mubr.bf16.gmra.mxu0 %v146
    %v302 = vpop.f32.mrf.mxu0
    %v303 = vadd.f32 %v85, %v302
    %v304 = vpop.f32.mrf.mxu0
    %v305 = vpop.f32.mrf.mxu0
    %v306 = vadd.f32 %v85, %v305
    %v307 = vpop.f32.mrf.mxu0
    %308 = vdwg.mxu0
    %v309 = vmax.f32 %v183, 0.0
    %v310 = vmax.f32 %v186, 0.0
    %v311 = vmax.f32 %v191, 0.0
    %v312 = vmax.f32 %v194, 0.0
    %v313 = vmax.f32 %v199, 0.0
    %v314 = vmax.f32 %v202, 0.0
    %v315 = vmax.f32 %v207, 0.0
    %v316 = vmax.f32 %v210, 0.0
    %v317 = vmax.f32 %v215, 0.0
    %v318 = vmax.f32 %v218, 0.0
    %v319 = vmax.f32 %v223, 0.0
    %v320 = vmax.f32 %v226, 0.0
    %v321 = vmax.f32 %v231, 0.0
    %v322 = vmax.f32 %v234, 0.0
    %v323 = vmax.f32 %v239, 0.0
    %v324 = vmax.f32 %v242, 0.0
    %v325 = vmax.f32 %v247, 0.0
    %v326 = vmax.f32 %v250, 0.0
    %v327 = vmax.f32 %v255, 0.0
    %v328 = vmax.f32 %v258, 0.0
    %v329 = vmax.f32 %v263, 0.0
    %v330 = vmax.f32 %v266, 0.0
    %v331 = vmax.f32 %v271, 0.0
    %v332 = vmax.f32 %v274, 0.0
    %v333 = vmax.f32 %v279, 0.0
    %v334 = vmax.f32 %v282, 0.0
    %v335 = vmax.f32 %v287, 0.0
    %v336 = vmax.f32 %v290, 0.0
    %v337 = vmax.f32 %v295, 0.0
    %v338 = vmax.f32 %v298, 0.0
    %v339 = vmax.f32 %v303, 0.0
    %v340 = vmax.f32 %v306, 0.0
    %v341 = vpack.c.bf16 %v310, %v309
    %v342 = vpack.c.bf16 %v312, %v311
    %v343 = vpack.c.bf16 %v314, %v313
    %v344 = vpack.c.bf16 %v316, %v315
    %v345 = vpack.c.bf16 %v318, %v317
    %v346 = vpack.c.bf16 %v320, %v319
    %v347 = vpack.c.bf16 %v322, %v321
    %v348 = vpack.c.bf16 %v324, %v323
    %v349 = vpack.c.bf16 %v326, %v325
    %v350 = vpack.c.bf16 %v328, %v327
    %v351 = vpack.c.bf16 %v330, %v329
    %v352 = vpack.c.bf16 %v332, %v331
    %v353 = vpack.c.bf16 %v334, %v333
    %v354 = vpack.c.bf16 %v336, %v335
    %v355 = vpack.c.bf16 %v338, %v337
    %v356 = vpack.c.bf16 %v340, %v339
    %v357 = vld [vmem:[%s3] sm:$0xf]
    %v358 = vld [vmem:[%s3 + $0x4] sm:$0xf]
    %v359 = vld [vmem:[%s3 + $0x8] sm:$0xf]
    %v360 = vld [vmem:[%s3 + $0xc] sm:$0xf]
    %v361 = vld [vmem:[%s3 + $0x10] sm:$0xf]
    %v362 = vld [vmem:[%s3 + $0x14] sm:$0xf]
    %v363 = vld [vmem:[%s3 + $0x18] sm:$0xf]
    %v364 = vld [vmem:[%s3 + $0x1c] sm:$0xf]
    %v365 = vld [vmem:[%s3 + $0x20] sm:$0xf]
    %v366 = vld [vmem:[%s3 + $0x24] sm:$0xf]
    %v367 = vld [vmem:[%s3 + $0x28] sm:$0xf]
    %v368 = vld [vmem:[%s3 + $0x2c] sm:$0xf]
    %v369 = vld [vmem:[%s3 + $0x30] sm:$0xf]
    %v370 = vld [vmem:[%s3 + $0x34] sm:$0xf]
    %v371 = vld [vmem:[%s3 + $0x38] sm:$0xf]
    %v372 = vld [vmem:[%s3 + $0x3c] sm:$0xf]
    %v373 = vld [vmem:[%s4] sm:$0x1]
    %v375 = vlaneseq
    %v376 = vshrl.u32 %v375, 7
    %v377 = vsub.s32 0, %v376
    %v378 = vrot.slane %v373, %v377
    %v396 = vunpack.c.l.b16 %v357
    %v397 = vunpack.c.l.b16 %v358
    %v398 = vunpack.c.l.b16 %v359
    %v399 = vunpack.c.l.b16 %v360
    %v400 = vunpack.c.l.b16 %v361
    %v401 = vunpack.c.l.b16 %v362
    %v402 = vunpack.c.l.b16 %v363
    %v403 = vunpack.c.l.b16 %v364
    %v404 = vunpack.c.l.b16 %v365
    %v405 = vunpack.c.l.b16 %v366
    %v406 = vunpack.c.l.b16 %v367
    %v407 = vunpack.c.l.b16 %v368
    %v408 = vunpack.c.l.b16 %v369
    %v409 = vunpack.c.l.b16 %v370
    %v410 = vunpack.c.l.b16 %v371
    %v411 = vunpack.c.l.b16 %v372
    %v412 = vpack.c.b16 %v397, %v396
    %v413 = vpack.c.b16 %v399, %v398
    %v414 = vpack.c.b16 %v401, %v400
    %v415 = vpack.c.b16 %v403, %v402
    %v416 = vpack.c.b16 %v405, %v404
    %v417 = vpack.c.b16 %v407, %v406
    %v418 = vpack.c.b16 %v409, %v408
    %v419 = vpack.c.b16 %v411, %v410
    %428 = vmatprep.subr.bf16.mxu0 0
    %429 = vmatpush1.bf16.msra.mxu0 %v419
    %430 = vmatprep.subr.bf16.mxu0 0
    %431 = vmatpush1.bf16.msra.mxu0 %v418
    %432 = vmatprep.subr.bf16.mxu0 0
    %433 = vmatpush1.bf16.msra.mxu0 %v417
    %434 = vmatprep.subr.bf16.mxu0 0
    %435 = vmatpush1.bf16.msra.mxu0 %v416
    %436 = vmatprep.subr.bf16.mxu0 0
    %437 = vmatpush1.bf16.msra.mxu0 %v415
    %438 = vmatprep.subr.bf16.mxu0 0
    %439 = vmatpush1.bf16.msra.mxu0 %v414
    %440 = vmatprep.subr.bf16.mxu0 0
    %441 = vmatpush1.bf16.msra.mxu0 %v413
    %442 = vmatprep.subr.bf16.mxu0 0
    %443 = vmatpush1.bf16.msra.mxu0 %v412
    %444 = vmatprep.subr.bf16.mxu0 0
    %445 = vmatpush2.bf16.msra.mxu0 0
    %446 = vmatprep.subr.bf16.mxu0 0
    %447 = vmatpush2.bf16.msra.mxu0 0
    %448 = vmatprep.subr.bf16.mxu0 0
    %449 = vmatpush2.bf16.msra.mxu0 0
    %450 = vmatprep.subr.bf16.mxu0 0
    %451 = vmatpush2.bf16.msra.mxu0 0
    %452 = vmatprep.subr.bf16.mxu0 0
    %453 = vmatpush2.bf16.msra.mxu0 0
    %454 = vmatprep.subr.bf16.mxu0 0
    %455 = vmatpush2.bf16.msra.mxu0 0
    %456 = vmatprep.subr.bf16.mxu0 0
    %457 = vmatpush2.bf16.msra.mxu0 0
    %458 = vmatprep.subr.bf16.mxu0 0
    %459 = vmatpush2.bf16.msra.mxu0 0
    %460 = vmatprep.mubr.bf16.mxu0 0
    %461 = vmatmul.mubr.bf16.gmra.mxu0 %v341
    %v462 = vpop.f32.mrf.mxu0
    %v463 = vadd.f32 %v378, %v462
    %v464 = vpop.f32.mrf.mxu0
    %v465 = vpop.f32.mrf.mxu0
    %v466 = vadd.f32 %v378, %v465
    %v467 = vpop.f32.mrf.mxu0
    %468 = vmatprep.mubr.bf16.mxu0 0
    %469 = vmatmul.mubr.bf16.gmra.mxu0 %v342
    %v470 = vpop.f32.mrf.mxu0
    %v471 = vadd.f32 %v378, %v470
    %v472 = vpop.f32.mrf.mxu0
    %v473 = vpop.f32.mrf.mxu0
    %v474 = vadd.f32 %v378, %v473
    %v475 = vpop.f32.mrf.mxu0
    %476 = vmatprep.mubr.bf16.mxu0 0
    %477 = vmatmul.mubr.bf16.gmra.mxu0 %v343
    %v478 = vpop.f32.mrf.mxu0
    %v479 = vadd.f32 %v378, %v478
    %v480 = vpop.f32.mrf.mxu0
    %v481 = vpop.f32.mrf.mxu0
    %v482 = vadd.f32 %v378, %v481
    %v483 = vpop.f32.mrf.mxu0
    %484 = vmatprep.mubr.bf16.mxu0 0
    %485 = vmatmul.mubr.bf16.gmra.mxu0 %v344
    %v486 = vpop.f32.mrf.mxu0
    %v487 = vadd.f32 %v378, %v486
    %v488 = vpop.f32.mrf.mxu0
    %v489 = vpop.f32.mrf.mxu0
    %v490 = vadd.f32 %v378, %v489
    %v491 = vpop.f32.mrf.mxu0
    %492 = vmatprep.mubr.bf16.mxu0 0
    %493 = vmatmul.mubr.bf16.gmra.mxu0 %v345
    %v494 = vpop.f32.mrf.mxu0
    %v495 = vadd.f32 %v378, %v494
    %v496 = vpop.f32.mrf.mxu0
    %v497 = vpop.f32.mrf.mxu0
    %v498 = vadd.f32 %v378, %v497
    %v499 = vpop.f32.mrf.mxu0
    %500 = vmatprep.mubr.bf16.mxu0 0
    %501 = vmatmul.mubr.bf16.gmra.mxu0 %v346
    %v502 = vpop.f32.mrf.mxu0
    %v503 = vadd.f32 %v378, %v502
    %v504 = vpop.f32.mrf.mxu0
    %v505 = vpop.f32.mrf.mxu0
    %v506 = vadd.f32 %v378, %v505
    %v507 = vpop.f32.mrf.mxu0
    %508 = vmatprep.mubr.bf16.mxu0 0
    %509 = vmatmul.mubr.bf16.gmra.mxu0 %v347
    %v510 = vpop.f32.mrf.mxu0
    %v511 = vadd.f32 %v378, %v510
    %v512 = vpop.f32.mrf.mxu0
    %v513 = vpop.f32.mrf.mxu0
    %v514 = vadd.f32 %v378, %v513
    %v515 = vpop.f32.mrf.mxu0
    %516 = vmatprep.mubr.bf16.mxu0 0
    %517 = vmatmul.mubr.bf16.gmra.mxu0 %v348
    %v518 = vpop.f32.mrf.mxu0
    %v519 = vadd.f32 %v378, %v518
    %v520 = vpop.f32.mrf.mxu0
    %v521 = vpop.f32.mrf.mxu0
    %v522 = vadd.f32 %v378, %v521
    %v523 = vpop.f32.mrf.mxu0
    %524 = vmatprep.mubr.bf16.mxu0 0
    %525 = vmatmul.mubr.bf16.gmra.mxu0 %v349
    %v526 = vpop.f32.mrf.mxu0
    %v527 = vadd.f32 %v378, %v526
    %v528 = vpop.f32.mrf.mxu0
    %v529 = vpop.f32.mrf.mxu0
    %v530 = vadd.f32 %v378, %v529
    %v531 = vpop.f32.mrf.mxu0
    %532 = vmatprep.mubr.bf16.mxu0 0
    %533 = vmatmul.mubr.bf16.gmra.mxu0 %v350
    %v534 = vpop.f32.mrf.mxu0
    %v535 = vadd.f32 %v378, %v534
    %v536 = vpop.f32.mrf.mxu0
    %v537 = vpop.f32.mrf.mxu0
    %v538 = vadd.f32 %v378, %v537
    %v539 = vpop.f32.mrf.mxu0
    %540 = vmatprep.mubr.bf16.mxu0 0
    %541 = vmatmul.mubr.bf16.gmra.mxu0 %v351
    %v542 = vpop.f32.mrf.mxu0
    %v543 = vadd.f32 %v378, %v542
    %v544 = vpop.f32.mrf.mxu0
    %v545 = vpop.f32.mrf.mxu0
    %v546 = vadd.f32 %v378, %v545
    %v547 = vpop.f32.mrf.mxu0
    %548 = vmatprep.mubr.bf16.mxu0 0
    %549 = vmatmul.mubr.bf16.gmra.mxu0 %v352
    %v550 = vpop.f32.mrf.mxu0
    %v551 = vadd.f32 %v378, %v550
    %v552 = vpop.f32.mrf.mxu0
    %v553 = vpop.f32.mrf.mxu0
    %v554 = vadd.f32 %v378, %v553
    %v555 = vpop.f32.mrf.mxu0
    %556 = vmatprep.mubr.bf16.mxu0 0
    %557 = vmatmul.mubr.bf16.gmra.mxu0 %v353
    %v558 = vpop.f32.mrf.mxu0
    %v559 = vadd.f32 %v378, %v558
    %v560 = vpop.f32.mrf.mxu0
    %v561 = vpop.f32.mrf.mxu0
    %v562 = vadd.f32 %v378, %v561
    %v563 = vpop.f32.mrf.mxu0
    %564 = vmatprep.mubr.bf16.mxu0 0
    %565 = vmatmul.mubr.bf16.gmra.mxu0 %v354
    %v566 = vpop.f32.mrf.mxu0
    %v567 = vadd.f32 %v378, %v566
    %v568 = vpop.f32.mrf.mxu0
    %v569 = vpop.f32.mrf.mxu0
    %v570 = vadd.f32 %v378, %v569
    %v571 = vpop.f32.mrf.mxu0
    %572 = vmatprep.mubr.bf16.mxu0 0
    %573 = vmatmul.mubr.bf16.gmra.mxu0 %v355
    %v574 = vpop.f32.mrf.mxu0
    %v575 = vadd.f32 %v378, %v574
    %v576 = vpop.f32.mrf.mxu0
    %v577 = vpop.f32.mrf.mxu0
    %v578 = vadd.f32 %v378, %v577
    %v579 = vpop.f32.mrf.mxu0
    %580 = vmatprep.mubr.bf16.mxu0 0
    %581 = vmatmul.mubr.bf16.gmra.mxu0 %v356
    %v582 = vpop.f32.mrf.mxu0
    %v583 = vadd.f32 %v378, %v582
    %v584 = vpop.f32.mrf.mxu0
    %v585 = vpop.f32.mrf.mxu0
    %v586 = vadd.f32 %v378, %v585
    %v587 = vpop.f32.mrf.mxu0
    %588 = vdwg.mxu0
    %v589 = vmax.f32 %v463, 0.0
    %v590 = vmax.f32 %v466, 0.0
    %v591 = vmax.f32 %v471, 0.0
    %v592 = vmax.f32 %v474, 0.0
    %v593 = vmax.f32 %v479, 0.0
    %v594 = vmax.f32 %v482, 0.0
    %v595 = vmax.f32 %v487, 0.0
    %v596 = vmax.f32 %v490, 0.0
    %v597 = vmax.f32 %v495, 0.0
    %v598 = vmax.f32 %v498, 0.0
    %v599 = vmax.f32 %v503, 0.0
    %v600 = vmax.f32 %v506, 0.0
    %v601 = vmax.f32 %v511, 0.0
    %v602 = vmax.f32 %v514, 0.0
    %v603 = vmax.f32 %v519, 0.0
    %v604 = vmax.f32 %v522, 0.0
    %v605 = vmax.f32 %v527, 0.0
    %v606 = vmax.f32 %v530, 0.0
    %v607 = vmax.f32 %v535, 0.0
    %v608 = vmax.f32 %v538, 0.0
    %v609 = vmax.f32 %v543, 0.0
    %v610 = vmax.f32 %v546, 0.0
    %v611 = vmax.f32 %v551, 0.0
    %v612 = vmax.f32 %v554, 0.0
    %v613 = vmax.f32 %v559, 0.0
    %v614 = vmax.f32 %v562, 0.0
    %v615 = vmax.f32 %v567, 0.0
    %v616 = vmax.f32 %v570, 0.0
    %v617 = vmax.f32 %v575, 0.0
    %v618 = vmax.f32 %v578, 0.0
    %v619 = vmax.f32 %v583, 0.0
    %v620 = vmax.f32 %v586, 0.0
    %v621 = vpack.c.bf16 %v590, %v589
    %v622 = vpack.c.bf16 %v592, %v591
    %v623 = vpack.c.bf16 %v594, %v593
    %v624 = vpack.c.bf16 %v596, %v595
    %v625 = vpack.c.bf16 %v598, %v597
    %v626 = vpack.c.bf16 %v600, %v599
    %v627 = vpack.c.bf16 %v602, %v601
    %v628 = vpack.c.bf16 %v604, %v603
    %v629 = vpack.c.bf16 %v606, %v605
    %v630 = vpack.c.bf16 %v608, %v607
    %v631 = vpack.c.bf16 %v610, %v609
    %v632 = vpack.c.bf16 %v612, %v611
    %v633 = vpack.c.bf16 %v614, %v613
    %v634 = vpack.c.bf16 %v616, %v615
    %v635 = vpack.c.bf16 %v618, %v617
    %v636 = vpack.c.bf16 %v620, %v619
    %v637 = vld [vmem:[%s5] sm:$0xf]
    %v638 = vld [vmem:[%s5 + $0x4] sm:$0xf]
    %v639 = vld [vmem:[%s5 + $0x8] sm:$0xf]
    %v640 = vld [vmem:[%s5 + $0xc] sm:$0xf]
    %v641 = vld [vmem:[%s5 + $0x10] sm:$0xf]
    %v642 = vld [vmem:[%s5 + $0x14] sm:$0xf]
    %v643 = vld [vmem:[%s5 + $0x18] sm:$0xf]
    %v644 = vld [vmem:[%s5 + $0x1c] sm:$0xf]
    %v645 = vld [vmem:[%s5 + $0x20] sm:$0xf]
    %v646 = vld [vmem:[%s5 + $0x24] sm:$0xf]
    %v647 = vld [vmem:[%s5 + $0x28] sm:$0xf]
    %v648 = vld [vmem:[%s5 + $0x2c] sm:$0xf]
    %v649 = vld [vmem:[%s5 + $0x30] sm:$0xf]
    %v650 = vld [vmem:[%s5 + $0x34] sm:$0xf]
    %v651 = vld [vmem:[%s5 + $0x38] sm:$0xf]
    %v652 = vld [vmem:[%s5 + $0x3c] sm:$0xf]
    %v653 = vld [vmem:[%s6] sm:$0x1]
    %v655 = vlaneseq
    %v656 = vshrl.u32 %v655, 7
    %v657 = vsub.s32 0, %v656
    %v658 = vrot.slane %v653, %v657
    %v676 = vunpack.c.l.b16 %v637
    %v677 = vunpack.c.l.b16 %v638
    %v678 = vunpack.c.l.b16 %v639
    %v679 = vunpack.c.l.b16 %v640
    %v680 = vunpack.c.l.b16 %v641
    %v681 = vunpack.c.l.b16 %v642
    %v682 = vunpack.c.l.b16 %v643
    %v683 = vunpack.c.l.b16 %v644
    %v684 = vunpack.c.l.b16 %v645
    %v685 = vunpack.c.l.b16 %v646
    %v686 = vunpack.c.l.b16 %v647
    %v687 = vunpack.c.l.b16 %v648
    %v688 = vunpack.c.l.b16 %v649
    %v689 = vunpack.c.l.b16 %v650
    %v690 = vunpack.c.l.b16 %v651
    %v691 = vunpack.c.l.b16 %v652
    %v692 = vpack.c.b16 %v677, %v676
    %v693 = vpack.c.b16 %v679, %v678
    %v694 = vpack.c.b16 %v681, %v680
    %v695 = vpack.c.b16 %v683, %v682
    %v696 = vpack.c.b16 %v685, %v684
    %v697 = vpack.c.b16 %v687, %v686
    %v698 = vpack.c.b16 %v689, %v688
    %v699 = vpack.c.b16 %v691, %v690
    %708 = vmatprep.subr.bf16.mxu0 0
    %709 = vmatpush1.bf16.msra.mxu0 %v699
    %710 = vmatprep.subr.bf16.mxu0 0
    %711 = vmatpush1.bf16.msra.mxu0 %v698
    %712 = vmatprep.subr.bf16.mxu0 0
    %713 = vmatpush1.bf16.msra.mxu0 %v697
    %714 = vmatprep.subr.bf16.mxu0 0
    %715 = vmatpush1.bf16.msra.mxu0 %v696
    %716 = vmatprep.subr.bf16.mxu0 0
    %717 = vmatpush1.bf16.msra.mxu0 %v695
    %718 = vmatprep.subr.bf16.mxu0 0
    %719 = vmatpush1.bf16.msra.mxu0 %v694
    %720 = vmatprep.subr.bf16.mxu0 0
    %721 = vmatpush1.bf16.msra.mxu0 %v693
    %722 = vmatprep.subr.bf16.mxu0 0
    %723 = vmatpush1.bf16.msra.mxu0 %v692
    %724 = vmatprep.subr.bf16.mxu0 0
    %725 = vmatpush2.bf16.msra.mxu0 0
    %726 = vmatprep.subr.bf16.mxu0 0
    %727 = vmatpush2.bf16.msra.mxu0 0
    %728 = vmatprep.subr.bf16.mxu0 0
    %729 = vmatpush2.bf16.msra.mxu0 0
    %730 = vmatprep.subr.bf16.mxu0 0
    %731 = vmatpush2.bf16.msra.mxu0 0
    %732 = vmatprep.subr.bf16.mxu0 0
    %733 = vmatpush2.bf16.msra.mxu0 0
    %734 = vmatprep.subr.bf16.mxu0 0
    %735 = vmatpush2.bf16.msra.mxu0 0
    %736 = vmatprep.subr.bf16.mxu0 0
    %737 = vmatpush2.bf16.msra.mxu0 0
    %738 = vmatprep.subr.bf16.mxu0 0
    %739 = vmatpush2.bf16.msra.mxu0 0
    %740 = vmatprep.mubr.bf16.mxu0 0
    %741 = vmatmul.mubr.bf16.gmra.mxu0 %v621
    %v742 = vpop.f32.mrf.mxu0
    %v743 = vadd.f32 %v658, %v742
    %v744 = vpop.f32.mrf.mxu0
    %v745 = vpop.f32.mrf.mxu0
    %v746 = vadd.f32 %v658, %v745
    %v747 = vpop.f32.mrf.mxu0
    %748 = vmatprep.mubr.bf16.mxu0 0
    %749 = vmatmul.mubr.bf16.gmra.mxu0 %v622
    %v750 = vpop.f32.mrf.mxu0
    %v751 = vadd.f32 %v658, %v750
    %v752 = vpop.f32.mrf.mxu0
    %v753 = vpop.f32.mrf.mxu0
    %v754 = vadd.f32 %v658, %v753
    %v755 = vpop.f32.mrf.mxu0
    %756 = vmatprep.mubr.bf16.mxu0 0
    %757 = vmatmul.mubr.bf16.gmra.mxu0 %v623
    %v758 = vpop.f32.mrf.mxu0
    %v759 = vadd.f32 %v658, %v758
    %v760 = vpop.f32.mrf.mxu0
    %v761 = vpop.f32.mrf.mxu0
    %v762 = vadd.f32 %v658, %v761
    %v763 = vpop.f32.mrf.mxu0
    %764 = vmatprep.mubr.bf16.mxu0 0
    %765 = vmatmul.mubr.bf16.gmra.mxu0 %v624
    %v766 = vpop.f32.mrf.mxu0
    %v767 = vadd.f32 %v658, %v766
    %v768 = vpop.f32.mrf.mxu0
    %v769 = vpop.f32.mrf.mxu0
    %v770 = vadd.f32 %v658, %v769
    %v771 = vpop.f32.mrf.mxu0
    %772 = vmatprep.mubr.bf16.mxu0 0
    %773 = vmatmul.mubr.bf16.gmra.mxu0 %v625
    %v774 = vpop.f32.mrf.mxu0
    %v775 = vadd.f32 %v658, %v774
    %v776 = vpop.f32.mrf.mxu0
    %v777 = vpop.f32.mrf.mxu0
    %v778 = vadd.f32 %v658, %v777
    %v779 = vpop.f32.mrf.mxu0
    %780 = vmatprep.mubr.bf16.mxu0 0
    %781 = vmatmul.mubr.bf16.gmra.mxu0 %v626
    %v782 = vpop.f32.mrf.mxu0
    %v783 = vadd.f32 %v658, %v782
    %v784 = vpop.f32.mrf.mxu0
    %v785 = vpop.f32.mrf.mxu0
    %v786 = vadd.f32 %v658, %v785
    %v787 = vpop.f32.mrf.mxu0
    %788 = vmatprep.mubr.bf16.mxu0 0
    %789 = vmatmul.mubr.bf16.gmra.mxu0 %v627
    %v790 = vpop.f32.mrf.mxu0
    %v791 = vadd.f32 %v658, %v790
    %v792 = vpop.f32.mrf.mxu0
    %v793 = vpop.f32.mrf.mxu0
    %v794 = vadd.f32 %v658, %v793
    %v795 = vpop.f32.mrf.mxu0
    %796 = vmatprep.mubr.bf16.mxu0 0
    %797 = vmatmul.mubr.bf16.gmra.mxu0 %v628
    %v798 = vpop.f32.mrf.mxu0
    %v799 = vadd.f32 %v658, %v798
    %v800 = vpop.f32.mrf.mxu0
    %v801 = vpop.f32.mrf.mxu0
    %v802 = vadd.f32 %v658, %v801
    %v803 = vpop.f32.mrf.mxu0
    %804 = vmatprep.mubr.bf16.mxu0 0
    %805 = vmatmul.mubr.bf16.gmra.mxu0 %v629
    %v806 = vpop.f32.mrf.mxu0
    %v807 = vadd.f32 %v658, %v806
    %v808 = vpop.f32.mrf.mxu0
    %v809 = vpop.f32.mrf.mxu0
    %v810 = vadd.f32 %v658, %v809
    %v811 = vpop.f32.mrf.mxu0
    %812 = vmatprep.mubr.bf16.mxu0 0
    %813 = vmatmul.mubr.bf16.gmra.mxu0 %v630
    %v814 = vpop.f32.mrf.mxu0
    %v815 = vadd.f32 %v658, %v814
    %v816 = vpop.f32.mrf.mxu0
    %v817 = vpop.f32.mrf.mxu0
    %v818 = vadd.f32 %v658, %v817
    %v819 = vpop.f32.mrf.mxu0
    %820 = vmatprep.mubr.bf16.mxu0 0
    %821 = vmatmul.mubr.bf16.gmra.mxu0 %v631
    %v822 = vpop.f32.mrf.mxu0
    %v823 = vadd.f32 %v658, %v822
    %v824 = vpop.f32.mrf.mxu0
    %v825 = vpop.f32.mrf.mxu0
    %v826 = vadd.f32 %v658, %v825
    %v827 = vpop.f32.mrf.mxu0
    %828 = vmatprep.mubr.bf16.mxu0 0
    %829 = vmatmul.mubr.bf16.gmra.mxu0 %v632
    %v830 = vpop.f32.mrf.mxu0
    %v831 = vadd.f32 %v658, %v830
    %v832 = vpop.f32.mrf.mxu0
    %v833 = vpop.f32.mrf.mxu0
    %v834 = vadd.f32 %v658, %v833
    %v835 = vpop.f32.mrf.mxu0
    %836 = vmatprep.mubr.bf16.mxu0 0
    %837 = vmatmul.mubr.bf16.gmra.mxu0 %v633
    %v838 = vpop.f32.mrf.mxu0
    %v839 = vadd.f32 %v658, %v838
    %v840 = vpop.f32.mrf.mxu0
    %v841 = vpop.f32.mrf.mxu0
    %v842 = vadd.f32 %v658, %v841
    %v843 = vpop.f32.mrf.mxu0
    %844 = vmatprep.mubr.bf16.mxu0 0
    %845 = vmatmul.mubr.bf16.gmra.mxu0 %v634
    %v846 = vpop.f32.mrf.mxu0
    %v847 = vadd.f32 %v658, %v846
    %v848 = vpop.f32.mrf.mxu0
    %v849 = vpop.f32.mrf.mxu0
    %v850 = vadd.f32 %v658, %v849
    %v851 = vpop.f32.mrf.mxu0
    %852 = vmatprep.mubr.bf16.mxu0 0
    %853 = vmatmul.mubr.bf16.gmra.mxu0 %v635
    %v854 = vpop.f32.mrf.mxu0
    %v855 = vadd.f32 %v658, %v854
    %v856 = vpop.f32.mrf.mxu0
    %v857 = vpop.f32.mrf.mxu0
    %v858 = vadd.f32 %v658, %v857
    %v859 = vpop.f32.mrf.mxu0
    %860 = vmatprep.mubr.bf16.mxu0 0
    %861 = vmatmul.mubr.bf16.gmra.mxu0 %v636
    %v862 = vpop.f32.mrf.mxu0
    %v863 = vadd.f32 %v658, %v862
    %v864 = vpop.f32.mrf.mxu0
    %v865 = vpop.f32.mrf.mxu0
    %v866 = vadd.f32 %v658, %v865
    %v867 = vpop.f32.mrf.mxu0
    %868 = vdwg.mxu0
    %869 = vmax.xlane.f32.xlu0 %v743
    %v870 = vpop.xlane.xlu0 %869
    %871 = vmax.xlane.f32.xlu0 %v746
    %v872 = vpop.xlane.xlu0 %871
    %873 = vmax.xlane.f32.xlu0 %v751
    %v874 = vpop.xlane.xlu0 %873
    %875 = vmax.xlane.f32.xlu0 %v754
    %v876 = vpop.xlane.xlu0 %875
    %877 = vmax.xlane.f32.xlu0 %v759
    %v878 = vpop.xlane.xlu0 %877
    %879 = vmax.xlane.f32.xlu0 %v762
    %v880 = vpop.xlane.xlu0 %879
    %881 = vmax.xlane.f32.xlu0 %v767
    %v882 = vpop.xlane.xlu0 %881
    %883 = vmax.xlane.f32.xlu0 %v770
    %v884 = vpop.xlane.xlu0 %883
    %885 = vmax.xlane.f32.xlu0 %v775
    %v886 = vpop.xlane.xlu0 %885
    %887 = vmax.xlane.f32.xlu0 %v778
    %v888 = vpop.xlane.xlu0 %887
    %889 = vmax.xlane.f32.xlu0 %v783
    %v890 = vpop.xlane.xlu0 %889
    %891 = vmax.xlane.f32.xlu0 %v786
    %v892 = vpop.xlane.xlu0 %891
    %893 = vmax.xlane.f32.xlu0 %v791
    %v894 = vpop.xlane.xlu0 %893
    %895 = vmax.xlane.f32.xlu0 %v794
    %v896 = vpop.xlane.xlu0 %895
    %897 = vmax.xlane.f32.xlu0 %v799
    %v898 = vpop.xlane.xlu0 %897
    %899 = vmax.xlane.f32.xlu0 %v802
    %v900 = vpop.xlane.xlu0 %899
    %901 = vmax.xlane.f32.xlu0 %v807
    %v902 = vpop.xlane.xlu0 %901
    %903 = vmax.xlane.f32.xlu0 %v810
    %v904 = vpop.xlane.xlu0 %903
    %905 = vmax.xlane.f32.xlu0 %v815
    %v906 = vpop.xlane.xlu0 %905
    %907 = vmax.xlane.f32.xlu0 %v818
    %v908 = vpop.xlane.xlu0 %907
    %909 = vmax.xlane.f32.xlu0 %v823
    %v910 = vpop.xlane.xlu0 %909
    %911 = vmax.xlane.f32.xlu0 %v826
    %v912 = vpop.xlane.xlu0 %911
    %913 = vmax.xlane.f32.xlu0 %v831
    %v914 = vpop.xlane.xlu0 %913
    %915 = vmax.xlane.f32.xlu0 %v834
    %v916 = vpop.xlane.xlu0 %915
    %917 = vmax.xlane.f32.xlu0 %v839
    %v918 = vpop.xlane.xlu0 %917
    %919 = vmax.xlane.f32.xlu0 %v842
    %v920 = vpop.xlane.xlu0 %919
    %921 = vmax.xlane.f32.xlu0 %v847
    %v922 = vpop.xlane.xlu0 %921
    %923 = vmax.xlane.f32.xlu0 %v850
    %v924 = vpop.xlane.xlu0 %923
    %925 = vmax.xlane.f32.xlu0 %v855
    %v926 = vpop.xlane.xlu0 %925
    %927 = vmax.xlane.f32.xlu0 %v858
    %v928 = vpop.xlane.xlu0 %927
    %929 = vmax.xlane.f32.xlu0 %v863
    %v930 = vpop.xlane.xlu0 %929
    %931 = vmax.xlane.f32.xlu0 %v866
    %v932 = vpop.xlane.xlu0 %931
    %v933 = vsub.f32 %v743, %v870
    %v934 = vsub.f32 %v746, %v872
    %v935 = vsub.f32 %v751, %v874
    %v936 = vsub.f32 %v754, %v876
    %v937 = vsub.f32 %v759, %v878
    %v938 = vsub.f32 %v762, %v880
    %v939 = vsub.f32 %v767, %v882
    %v940 = vsub.f32 %v770, %v884
    %v941 = vsub.f32 %v775, %v886
    %v942 = vsub.f32 %v778, %v888
    %v943 = vsub.f32 %v783, %v890
    %v944 = vsub.f32 %v786, %v892
    %v945 = vsub.f32 %v791, %v894
    %v946 = vsub.f32 %v794, %v896
    %v947 = vsub.f32 %v799, %v898
    %v948 = vsub.f32 %v802, %v900
    %v949 = vsub.f32 %v807, %v902
    %v950 = vsub.f32 %v810, %v904
    %v951 = vsub.f32 %v815, %v906
    %v952 = vsub.f32 %v818, %v908
    %v953 = vsub.f32 %v823, %v910
    %v954 = vsub.f32 %v826, %v912
    %v955 = vsub.f32 %v831, %v914
    %v956 = vsub.f32 %v834, %v916
    %v957 = vsub.f32 %v839, %v918
    %v958 = vsub.f32 %v842, %v920
    %v959 = vsub.f32 %v847, %v922
    %v960 = vsub.f32 %v850, %v924
    %v961 = vsub.f32 %v855, %v926
    %v962 = vsub.f32 %v858, %v928
    %v963 = vsub.f32 %v863, %v930
    %v964 = vsub.f32 %v866, %v932
    %v965 = vmul.f32 %v933, 1.442695
    %v966 = vpow.pop %v965
    %v967 = vmul.f32 %v934, 1.442695
    %v968 = vpow.pop %v967
    %v969 = vmul.f32 %v935, 1.442695
    %v970 = vpow.pop %v969
    %v971 = vmul.f32 %v936, 1.442695
    %v972 = vpow.pop %v971
    %v973 = vmul.f32 %v937, 1.442695
    %v974 = vpow.pop %v973
    %v975 = vmul.f32 %v938, 1.442695
    %v976 = vpow.pop %v975
    %v977 = vmul.f32 %v939, 1.442695
    %v978 = vpow.pop %v977
    %v979 = vmul.f32 %v940, 1.442695
    %v980 = vpow.pop %v979
    %v981 = vmul.f32 %v941, 1.442695
    %v982 = vpow.pop %v981
    %v983 = vmul.f32 %v942, 1.442695
    %v984 = vpow.pop %v983
    %v985 = vmul.f32 %v943, 1.442695
    %v986 = vpow.pop %v985
    %v987 = vmul.f32 %v944, 1.442695
    %v988 = vpow.pop %v987
    %v989 = vmul.f32 %v945, 1.442695
    %v990 = vpow.pop %v989
    %v991 = vmul.f32 %v946, 1.442695
    %v992 = vpow.pop %v991
    %v993 = vmul.f32 %v947, 1.442695
    %v994 = vpow.pop %v993
    %v995 = vmul.f32 %v948, 1.442695
    %v996 = vpow.pop %v995
    %v997 = vmul.f32 %v949, 1.442695
    %v998 = vpow.pop %v997
    %v999 = vmul.f32 %v950, 1.442695
    %v1000 = vpow.pop %v999
    %v1001 = vmul.f32 %v951, 1.442695
    %v1002 = vpow.pop %v1001
    %v1003 = vmul.f32 %v952, 1.442695
    %v1004 = vpow.pop %v1003
    %v1005 = vmul.f32 %v953, 1.442695
    %v1006 = vpow.pop %v1005
    %v1007 = vmul.f32 %v954, 1.442695
    %v1008 = vpow.pop %v1007
    %v1009 = vmul.f32 %v955, 1.442695
    %v1010 = vpow.pop %v1009
    %v1011 = vmul.f32 %v956, 1.442695
    %v1012 = vpow.pop %v1011
    %v1013 = vmul.f32 %v957, 1.442695
    %v1014 = vpow.pop %v1013
    %v1015 = vmul.f32 %v958, 1.442695
    %v1016 = vpow.pop %v1015
    %v1017 = vmul.f32 %v959, 1.442695
    %v1018 = vpow.pop %v1017
    %v1019 = vmul.f32 %v960, 1.442695
    %v1020 = vpow.pop %v1019
    %v1021 = vmul.f32 %v961, 1.442695
    %v1022 = vpow.pop %v1021
    %v1023 = vmul.f32 %v962, 1.442695
    %v1024 = vpow.pop %v1023
    %v1025 = vmul.f32 %v963, 1.442695
    %v1026 = vpow.pop %v1025
    %v1027 = vmul.f32 %v964, 1.442695
    %v1028 = vpow.pop %v1027
    %1029 = vadd.xlane.f32.xlu0 %v966
    %v1030 = vpop.xlane.xlu0 %1029
    %1031 = vadd.xlane.f32.xlu0 %v968
    %v1032 = vpop.xlane.xlu0 %1031
    %1033 = vadd.xlane.f32.xlu0 %v970
    %v1034 = vpop.xlane.xlu0 %1033
    %1035 = vadd.xlane.f32.xlu0 %v972
    %v1036 = vpop.xlane.xlu0 %1035
    %1037 = vadd.xlane.f32.xlu0 %v974
    %v1038 = vpop.xlane.xlu0 %1037
    %1039 = vadd.xlane.f32.xlu0 %v976
    %v1040 = vpop.xlane.xlu0 %1039
    %1041 = vadd.xlane.f32.xlu0 %v978
    %v1042 = vpop.xlane.xlu0 %1041
    %1043 = vadd.xlane.f32.xlu0 %v980
    %v1044 = vpop.xlane.xlu0 %1043
    %1045 = vadd.xlane.f32.xlu0 %v982
    %v1046 = vpop.xlane.xlu0 %1045
    %1047 = vadd.xlane.f32.xlu0 %v984
    %v1048 = vpop.xlane.xlu0 %1047
    %1049 = vadd.xlane.f32.xlu0 %v986
    %v1050 = vpop.xlane.xlu0 %1049
    %1051 = vadd.xlane.f32.xlu0 %v988
    %v1052 = vpop.xlane.xlu0 %1051
    %1053 = vadd.xlane.f32.xlu0 %v990
    %v1054 = vpop.xlane.xlu0 %1053
    %1055 = vadd.xlane.f32.xlu0 %v992
    %v1056 = vpop.xlane.xlu0 %1055
    %1057 = vadd.xlane.f32.xlu0 %v994
    %v1058 = vpop.xlane.xlu0 %1057
    %1059 = vadd.xlane.f32.xlu0 %v996
    %v1060 = vpop.xlane.xlu0 %1059
    %1061 = vadd.xlane.f32.xlu0 %v998
    %v1062 = vpop.xlane.xlu0 %1061
    %1063 = vadd.xlane.f32.xlu0 %v1000
    %v1064 = vpop.xlane.xlu0 %1063
    %1065 = vadd.xlane.f32.xlu0 %v1002
    %v1066 = vpop.xlane.xlu0 %1065
    %1067 = vadd.xlane.f32.xlu0 %v1004
    %v1068 = vpop.xlane.xlu0 %1067
    %1069 = vadd.xlane.f32.xlu0 %v1006
    %v1070 = vpop.xlane.xlu0 %1069
    %1071 = vadd.xlane.f32.xlu0 %v1008
    %v1072 = vpop.xlane.xlu0 %1071
    %1073 = vadd.xlane.f32.xlu0 %v1010
    %v1074 = vpop.xlane.xlu0 %1073
    %1075 = vadd.xlane.f32.xlu0 %v1012
    %v1076 = vpop.xlane.xlu0 %1075
    %1077 = vadd.xlane.f32.xlu0 %v1014
    %v1078 = vpop.xlane.xlu0 %1077
    %1079 = vadd.xlane.f32.xlu0 %v1016
    %v1080 = vpop.xlane.xlu0 %1079
    %1081 = vadd.xlane.f32.xlu0 %v1018
    %v1082 = vpop.xlane.xlu0 %1081
    %1083 = vadd.xlane.f32.xlu0 %v1020
    %v1084 = vpop.xlane.xlu0 %1083
    %1085 = vadd.xlane.f32.xlu0 %v1022
    %v1086 = vpop.xlane.xlu0 %1085
    %1087 = vadd.xlane.f32.xlu0 %v1024
    %v1088 = vpop.xlane.xlu0 %1087
    %1089 = vadd.xlane.f32.xlu0 %v1026
    %v1090 = vpop.xlane.xlu0 %1089
    %1091 = vadd.xlane.f32.xlu0 %v1028
    %v1092 = vpop.xlane.xlu0 %1091
    %v1093 = vlog2.pop %v1030
    %v1094 = vmul.f32 %v1093, 0.6931472
    %v1095 = vlog2.pop %v1032
    %v1096 = vmul.f32 %v1095, 0.6931472
    %v1097 = vlog2.pop %v1034
    %v1098 = vmul.f32 %v1097, 0.6931472
    %v1099 = vlog2.pop %v1036
    %v1100 = vmul.f32 %v1099, 0.6931472
    %v1101 = vlog2.pop %v1038
    %v1102 = vmul.f32 %v1101, 0.6931472
    %v1103 = vlog2.pop %v1040
    %v1104 = vmul.f32 %v1103, 0.6931472
    %v1105 = vlog2.pop %v1042
    %v1106 = vmul.f32 %v1105, 0.6931472
    %v1107 = vlog2.pop %v1044
    %v1108 = vmul.f32 %v1107, 0.6931472
    %v1109 = vlog2.pop %v1046
    %v1110 = vmul.f32 %v1109, 0.6931472
    %v1111 = vlog2.pop %v1048
    %v1112 = vmul.f32 %v1111, 0.6931472
    %v1113 = vlog2.pop %v1050
    %v1114 = vmul.f32 %v1113, 0.6931472
    %v1115 = vlog2.pop %v1052
    %v1116 = vmul.f32 %v1115, 0.6931472
    %v1117 = vlog2.pop %v1054
    %v1118 = vmul.f32 %v1117, 0.6931472
    %v1119 = vlog2.pop %v1056
    %v1120 = vmul.f32 %v1119, 0.6931472
    %v1121 = vlog2.pop %v1058
    %v1122 = vmul.f32 %v1121, 0.6931472
    %v1123 = vlog2.pop %v1060
    %v1124 = vmul.f32 %v1123, 0.6931472
    %v1125 = vlog2.pop %v1062
    %v1126 = vmul.f32 %v1125, 0.6931472
    %v1127 = vlog2.pop %v1064
    %v1128 = vmul.f32 %v1127, 0.6931472
    %v1129 = vlog2.pop %v1066
    %v1130 = vmul.f32 %v1129, 0.6931472
    %v1131 = vlog2.pop %v1068
    %v1132 = vmul.f32 %v1131, 0.6931472
    %v1133 = vlog2.pop %v1070
    %v1134 = vmul.f32 %v1133, 0.6931472
    %v1135 = vlog2.pop %v1072
    %v1136 = vmul.f32 %v1135, 0.6931472
    %v1137 = vlog2.pop %v1074
    %v1138 = vmul.f32 %v1137, 0.6931472
    %v1139 = vlog2.pop %v1076
    %v1140 = vmul.f32 %v1139, 0.6931472
    %v1141 = vlog2.pop %v1078
    %v1142 = vmul.f32 %v1141, 0.6931472
    %v1143 = vlog2.pop %v1080
    %v1144 = vmul.f32 %v1143, 0.6931472
    %v1145 = vlog2.pop %v1082
    %v1146 = vmul.f32 %v1145, 0.6931472
    %v1147 = vlog2.pop %v1084
    %v1148 = vmul.f32 %v1147, 0.6931472
    %v1149 = vlog2.pop %v1086
    %v1150 = vmul.f32 %v1149, 0.6931472
    %v1151 = vlog2.pop %v1088
    %v1152 = vmul.f32 %v1151, 0.6931472
    %v1153 = vlog2.pop %v1090
    %v1154 = vmul.f32 %v1153, 0.6931472
    %v1155 = vlog2.pop %v1092
    %v1156 = vmul.f32 %v1155, 0.6931472
    %v1157 = vsub.f32 %v933, %v1094
    %v1158 = vsub.f32 %v934, %v1096
    %v1159 = vsub.f32 %v935, %v1098
    %v1160 = vsub.f32 %v936, %v1100
    %v1161 = vsub.f32 %v937, %v1102
    %v1162 = vsub.f32 %v938, %v1104
    %v1163 = vsub.f32 %v939, %v1106
    %v1164 = vsub.f32 %v940, %v1108
    %v1165 = vsub.f32 %v941, %v1110
    %v1166 = vsub.f32 %v942, %v1112
    %v1167 = vsub.f32 %v943, %v1114
    %v1168 = vsub.f32 %v944, %v1116
    %v1169 = vsub.f32 %v945, %v1118
    %v1170 = vsub.f32 %v946, %v1120
    %v1171 = vsub.f32 %v947, %v1122
    %v1172 = vsub.f32 %v948, %v1124
    %v1173 = vsub.f32 %v949, %v1126
    %v1174 = vsub.f32 %v950, %v1128
    %v1175 = vsub.f32 %v951, %v1130
    %v1176 = vsub.f32 %v952, %v1132
    %v1177 = vsub.f32 %v953, %v1134
    %v1178 = vsub.f32 %v954, %v1136
    %v1179 = vsub.f32 %v955, %v1138
    %v1180 = vsub.f32 %v956, %v1140
    %v1181 = vsub.f32 %v957, %v1142
    %v1182 = vsub.f32 %v958, %v1144
    %v1183 = vsub.f32 %v959, %v1146
    %v1184 = vsub.f32 %v960, %v1148
    %v1185 = vsub.f32 %v961, %v1150
    %v1186 = vsub.f32 %v962, %v1152
    %v1187 = vsub.f32 %v963, %v1154
    %v1188 = vsub.f32 %v964, %v1156
    %1189 = vst [vmem:[#allocation2] sm:$0xff] %v1157
    %1190 = vst [vmem:[#allocation2 + $0x8] sm:$0xff] %v1158
    %1191 = vst [vmem:[#allocation2 + $0x10] sm:$0xff] %v1159
    %1192 = vst [vmem:[#allocation2 + $0x18] sm:$0xff] %v1160
    %1193 = vst [vmem:[#allocation2 + $0x20] sm:$0xff] %v1161
    %1194 = vst [vmem:[#allocation2 + $0x28] sm:$0xff] %v1162
    %1195 = vst [vmem:[#allocation2 + $0x30] sm:$0xff] %v1163
    %1196 = vst [vmem:[#allocation2 + $0x38] sm:$0xff] %v1164
    %1197 = vst [vmem:[#allocation2 + $0x40] sm:$0xff] %v1165
    %1198 = vst [vmem:[#allocation2 + $0x48] sm:$0xff] %v1166
    %1199 = vst [vmem:[#allocation2 + $0x50] sm:$0xff] %v1167
    %1200 = vst [vmem:[#allocation2 + $0x58] sm:$0xff] %v1168
    %1201 = vst [vmem:[#allocation2 + $0x60] sm:$0xff] %v1169
    %1202 = vst [vmem:[#allocation2 + $0x68] sm:$0xff] %v1170
    %1203 = vst [vmem:[#allocation2 + $0x70] sm:$0xff] %v1171
    %1204 = vst [vmem:[#allocation2 + $0x78] sm:$0xff] %v1172
    %1205 = vst [vmem:[#allocation2 + $0x80] sm:$0xff] %v1173
    %1206 = vst [vmem:[#allocation2 + $0x88] sm:$0xff] %v1174
    %1207 = vst [vmem:[#allocation2 + $0x90] sm:$0xff] %v1175
    %1208 = vst [vmem:[#allocation2 + $0x98] sm:$0xff] %v1176
    %1209 = vst [vmem:[#allocation2 + $0xa0] sm:$0xff] %v1177
    %1210 = vst [vmem:[#allocation2 + $0xa8] sm:$0xff] %v1178
    %1211 = vst [vmem:[#allocation2 + $0xb0] sm:$0xff] %v1179
    %1212 = vst [vmem:[#allocation2 + $0xb8] sm:$0xff] %v1180
    %1213 = vst [vmem:[#allocation2 + $0xc0] sm:$0xff] %v1181
    %1214 = vst [vmem:[#allocation2 + $0xc8] sm:$0xff] %v1182
    %1215 = vst [vmem:[#allocation2 + $0xd0] sm:$0xff] %v1183
    %1216 = vst [vmem:[#allocation2 + $0xd8] sm:$0xff] %v1184
    %1217 = vst [vmem:[#allocation2 + $0xe0] sm:$0xff] %v1185
    %1218 = vst [vmem:[#allocation2 + $0xe8] sm:$0xff] %v1186
    %1219 = vst [vmem:[#allocation2 + $0xf0] sm:$0xff] %v1187
    %1220 = vst [vmem:[#allocation2 + $0xf8] sm:$0xff] %v1188
    // Predicated region
    $region30: #{ffnn_forward_padded.1} parent=1 // pred_check
      _
    $region31: #{ffnn_forward_padded.1} parent=1 // pred_check_branch
      %1222 = sbr.rel (0) target = $region33
    $region32: #{ffnn_forward_padded.1} parent=1 // pred_region
      %s1224 = ssub.s32 4096, 4096
      %1225 = vsyncadd [#allocation3], %s1224
      %s1226 = sshll.u32 [#allocation2], 4
      %s1227 = int_to_ptr.vmem [resolvable:$true] %s1226
      %1232 = dma.vmem_to_hbm [thread:$0]  %s1227, 4096, %s7, [#allocation3], 128, 128, 8
    $region33: #{ffnn_forward_padded.1} parent=1 // pred_fallthru
      _
    // Predicated region
    $region34: #{ffnn_forward_padded.1} parent=1 // pred_check
      _
    $region35: #{ffnn_forward_padded.1} parent=1 // pred_check_branch
      %1234 = sbr.rel (0) target = $region37
    $region36: #{ffnn_forward_padded.1} parent=1 // pred_region
      %1235 = dma.done [#allocation3], 4096
    $region37: #{ffnn_forward_padded.1} parent=1 // pred_fallthru
      _
    %1236 = vsyncpa [#allocation3], 1

</llo_original>
